<compile_context>
chip_gen: v5e
topology: v5e:2x2
jax: 0.10.0
libtpu: 0.0.40
codegen_flags: <defaults>
</compile_context>

<pallas_src>
import functools

import jax
import jax.numpy as jnp
from jax.experimental import pallas as pl
from jax.experimental.pallas import tpu as pltpu

LANES = 128          # lane width (last dim)
MAX_ROW_BLK = 2048   # rows per grid step -> 1 MiB f32 per input block
NUM_CHUNKS = 2       # leading 'parallel' grid axis (covers v7x's 2 TensorCores)
PAD_LOGIT = -1.0e4   # with target pad 0.0, padded slots contribute exactly 0 loss (gamma >= 0)


def _round_up(x, m):
    return (x + m - 1) // m * m


def _focal_kernel(x_ref, t_ref, out_ref, acc_ref, *, gamma):
    k = pl.program_id(1)

    @pl.when(k == 0)
    def _():
        acc_ref[...] = jnp.zeros_like(acc_ref)

    x = x_ref[...].astype(jnp.float32)
    t = t_ref[...].astype(jnp.float32)

    # Stable BCE-with-logits:
    #   x - x*t + max(-x,0) + log(exp(-max_val) + exp(-x - max_val))
    #     == max(x,0) - x*t + log1p(exp(-|x|))
    bce = jnp.maximum(x, 0.0) - x * t + jnp.log1p(jnp.exp(-jnp.abs(x)))

    # Focal modulation: exp(gamma * logsigmoid(-x * (2t - 1)))  (stable logsigmoid)
    z = -x * (t * 2.0 - 1.0)
    log_sig = jnp.minimum(z, 0.0) - jnp.log1p(jnp.exp(-jnp.abs(z)))

    acc_ref[...] += jnp.exp(log_sig * gamma) * bce

    @pl.when(k == pl.num_programs(1) - 1)
    def _():
        out_ref[0, 0] = jnp.sum(acc_ref[...])


def binary_focal_loss3(logits, targets, gamma=0.5):
    """Equivalent of BinaryFocalLoss3(gamma).forward(logits, targets) -> scalar f32."""
    lg = jnp.squeeze(logits)
    tg = jnp.squeeze(targets)
    if lg.shape != tg.shape:
        raise ValueError(
            "Target size ({}) must be the same as input size ({})".format(
                tg.shape, lg.shape))

    total_n = lg.size
    lg = lg.reshape(-1).astype(jnp.float32)
    tg = tg.reshape(-1).astype(jnp.float32)

    # Tiling: (rows, 128) lane-major, sublane-aligned row blocks.
    rows = pl.cdiv(total_n, LANES)
    row_blk = min(MAX_ROW_BLK, _round_up(rows, 8))
    blocks = pl.cdiv(rows, row_blk)
    n_chunks = min(blocks, NUM_CHUNKS)
    steps = pl.cdiv(blocks, n_chunks)
    padded_rows = n_chunks * steps * row_blk

    # Pad the flat tail so the grid divides evenly. Pad values are chosen so the
    # focal loss of a padded slot is exactly 0 (for gamma >= 0): bce == 0 and the
    # focal factor underflows to 0, so no in-kernel masking is needed.
    pad = padded_rows * LANES - total_n
    if pad:
        lg = jnp.pad(lg, (0, pad), constant_values=PAD_LOGIT)
        tg = jnp.pad(tg, (0, pad), constant_values=0.0)

    lg2 = lg.reshape(padded_rows, LANES)
    tg2 = tg.reshape(padded_rows, LANES)

    kernel = functools.partial(_focal_kernel, gamma=float(gamma))
    in_map = lambda c, k: (c * steps + k, 0)

    partials = pl.pallas_call(
        kernel,
        out_shape=jax.ShapeDtypeStruct((n_chunks, 1), jnp.float32),
        grid_spec=pltpu.PrefetchScalarGridSpec(
            num_scalar_prefetch=0,
            grid=(n_chunks, steps),
            in_specs=[
                pl.BlockSpec((row_blk, LANES), in_map),
                pl.BlockSpec((row_blk, LANES), in_map),
            ],
            out_specs=pl.BlockSpec(
                (1, 1), lambda c, k: (c, 0), memory_space=pltpu.SMEM),
            scratch_shapes=[pltpu.VMEM((row_blk, LANES), jnp.float32)],
        ),
        compiler_params=pltpu.CompilerParams(
            dimension_semantics=("parallel", "arbitrary")),
    )(lg2, tg2)

    return jnp.sum(partials) / jnp.float32(total_n)


if __name__ == "__main__":
    key = jax.random.PRNGKey(0)
    k1, k2 = jax.random.split(key)
    # NCHW: batch=2, channels=4, spatial=16x16
    logits = jax.random.normal(k1, (2, 4, 16, 16), dtype=jnp.float32)
    targets = (jax.random.uniform(k2, (2, 4, 16, 16)) > 0.5).astype(jnp.float32)

    gamma = 0.5
    loss = binary_focal_loss3(logits, targets, gamma=gamma)
    jax.block_until_ready(loss)

    # Pure-JAX reference mirroring the PyTorch formula exactly.
    x = logits
    t = targets
    max_val = jnp.maximum(-x, 0.0)
    bce = x - x * t + max_val + jnp.log(jnp.exp(-max_val) + jnp.exp(-x - max_val))
    invprobs = jax.nn.log_sigmoid(-x * (t * 2.0 - 1.0))
    ref = jnp.mean(jnp.exp(invprobs * gamma) * bce)

    assert jnp.allclose(loss, ref, rtol=1e-5, atol=1e-5), (loss, ref)
    print("KERNEL_OK")
</pallas_src>

<mosaic_0001>
module attributes {stable_mosaic.version = 11 : i64} {
  func.func @_focal_kernel(%arg0: i32, %arg1: i32, %arg2: memref<16x128xf32, #tpu.memory_space<vmem>>, %arg3: memref<16x128xf32, #tpu.memory_space<vmem>>, %arg4: memref<1x1xf32, #tpu.memory_space<smem>>, %arg5: memref<16x128xf32, #tpu.memory_space<vmem>>) attributes {dimension_semantics = [#tpu.dimension_semantics<parallel>, #tpu.dimension_semantics<arbitrary>], iteration_bounds = array<i64: 1, 1>, scalar_prefetch = 0 : i64, scratch_operands = 1 : i64, tpu.core_type = #tpu.core_type<tc>, window_params = [{transform_indices = @transform_0, window_bounds = array<i64: 16, 128>}, {transform_indices = @transform_1, window_bounds = array<i64: 16, 128>}, {transform_indices = @transform_2, window_bounds = array<i64: 1, 1>}]} {
    %c0_i32 = arith.constant 0 : i32
    %0 = arith.cmpi eq, %arg1, %c0_i32 : i32
    %1 = arith.extui %0 : i1 to i32
    %c0_i32_0 = arith.constant 0 : i32
    %2 = arith.cmpi ne, %1, %c0_i32_0 : i32
    scf.if %2 {
      %cst_17 = arith.constant 0.000000e+00 : f32
      %40 = vector.broadcast %cst_17 : f32 to vector<16x128xf32>
      %c0_18 = arith.constant 0 : index
      %c0_19 = arith.constant 0 : index
      %41 = vector.load %arg5[%c0_18, %c0_19] : memref<16x128xf32, #tpu.memory_space<vmem>>, vector<16x128xf32>
      tpu.vector_store %arg5[%c0_18, %c0_19], %40 {strides = array<i32>} : memref<16x128xf32, #tpu.memory_space<vmem>>, vector<16x128xf32>,
    } else {
    }
    %c0 = arith.constant 0 : index
    %c0_1 = arith.constant 0 : index
    %3 = vector.load %arg2[%c0, %c0_1] : memref<16x128xf32, #tpu.memory_space<vmem>>, vector<16x128xf32>
    %c0_2 = arith.constant 0 : index
    %c0_3 = arith.constant 0 : index
    %4 = vector.load %arg3[%c0_2, %c0_3] : memref<16x128xf32, #tpu.memory_space<vmem>>, vector<16x128xf32>
    %cst = arith.constant 0.000000e+00 : f32
    %5 = vector.broadcast %cst : f32 to vector<16x128xf32>
    %6 = arith.maximumf %3, %5 : vector<16x128xf32>
    %7 = arith.mulf %3, %4 : vector<16x128xf32>
    %8 = arith.subf %6, %7 : vector<16x128xf32>
    %9 = math.absf %3 : vector<16x128xf32>
    %cst_4 = arith.constant 0.000000e+00 : f32
    %10 = vector.broadcast %cst_4 : f32 to vector<16x128xf32>
    %11 = arith.subf %10, %9 : vector<16x128xf32>
    %12 = math.exp %11 : vector<16x128xf32>
    %13 = math.log1p %12 : vector<16x128xf32>
    %14 = arith.addf %8, %13 : vector<16x128xf32>
    %cst_5 = arith.constant 0.000000e+00 : f32
    %15 = vector.broadcast %cst_5 : f32 to vector<16x128xf32>
    %16 = arith.subf %15, %3 : vector<16x128xf32>
    %cst_6 = arith.constant 2.000000e+00 : f32
    %17 = vector.broadcast %cst_6 : f32 to vector<16x128xf32>
    %18 = arith.mulf %4, %17 : vector<16x128xf32>
    %cst_7 = arith.constant 1.000000e+00 : f32
    %19 = vector.broadcast %cst_7 : f32 to vector<16x128xf32>
    %20 = arith.subf %18, %19 : vector<16x128xf32>
    %21 = arith.mulf %16, %20 : vector<16x128xf32>
    %cst_8 = arith.constant 0.000000e+00 : f32
    %22 = vector.broadcast %cst_8 : f32 to vector<16x128xf32>
    %23 = arith.minimumf %21, %22 : vector<16x128xf32>
    %24 = math.absf %21 : vector<16x128xf32>
    %cst_9 = arith.constant 0.000000e+00 : f32
    %25 = vector.broadcast %cst_9 : f32 to vector<16x128xf32>
    %26 = arith.subf %25, %24 : vector<16x128xf32>
    %27 = math.exp %26 : vector<16x128xf32>
    %28 = math.log1p %27 : vector<16x128xf32>
    %29 = arith.subf %23, %28 : vector<16x128xf32>
    %c0_10 = arith.constant 0 : index
    %c0_11 = arith.constant 0 : index
    %30 = vector.load %arg5[%c0_10, %c0_11] : memref<16x128xf32, #tpu.memory_space<vmem>>, vector<16x128xf32>
    %cst_12 = arith.constant 5.000000e-01 : f32
    %31 = vector.broadcast %cst_12 : f32 to vector<16x128xf32>
    %32 = arith.mulf %29, %31 : vector<16x128xf32>
    %33 = math.exp %32 : vector<16x128xf32>
    %34 = arith.mulf %33, %14 : vector<16x128xf32>
    %35 = arith.addf %30, %34 : vector<16x128xf32>
    %c0_13 = arith.constant 0 : index
    %c0_14 = arith.constant 0 : index
    %36 = vector.load %arg5[%c0_13, %c0_14] : memref<16x128xf32, #tpu.memory_space<vmem>>, vector<16x128xf32>
    tpu.vector_store %arg5[%c0_13, %c0_14], %35 {strides = array<i32>} : memref<16x128xf32, #tpu.memory_space<vmem>>, vector<16x128xf32>,
    %c0_i32_15 = arith.constant 0 : i32
    %37 = arith.cmpi eq, %arg1, %c0_i32_15 : i32
    %38 = arith.extui %37 : i1 to i32
    %c0_i32_16 = arith.constant 0 : i32
    %39 = arith.cmpi ne, %38, %c0_i32_16 : i32
    scf.if %39 {
      %c0_17 = arith.constant 0 : index
      %c0_18 = arith.constant 0 : index
      %40 = vector.load %arg5[%c0_17, %c0_18] : memref<16x128xf32, #tpu.memory_space<vmem>>, vector<16x128xf32>
      %41 = vector.shape_cast %40 : vector<16x128xf32> to vector<1x16x128xf32>
      %cst_19 = arith.constant dense<0.000000e+00> : vector<1xf32>
      %42 = vector.multi_reduction <add>, %41, %cst_19 [1, 2] : vector<1x16x128xf32> to vector<1xf32>
      %43 = vector.shape_cast %42 : vector<1xf32> to vector<1x1x1xf32>
      %44 = vector.extract %43[0, 0, 0] : f32 from vector<1x1x1xf32>
      %c0_20 = arith.constant 0 : index
      %c0_21 = arith.constant 0 : index
      %45 = memref.load %arg4[%c0_20, %c0_21] : memref<1x1xf32, #tpu.memory_space<smem>>
      memref.store %44, %arg4[%c0_20, %c0_21] : memref<1x1xf32, #tpu.memory_space<smem>>
    } else {
    }
    return
  }
  func.func @transform_0(%arg0: i32, %arg1: i32) -> (i32, i32) {
    %c1_i32 = arith.constant 1 : i32
    %0 = arith.muli %arg0, %c1_i32 : i32
    %1 = arith.addi %0, %arg1 : i32
    %c0_i32 = arith.constant 0 : i32
    %c0_i32_0 = arith.constant 0 : i32
    return %1, %c0_i32 : i32, i32
  }
  func.func @transform_1(%arg0: i32, %arg1: i32) -> (i32, i32) {
    %c1_i32 = arith.constant 1 : i32
    %0 = arith.muli %arg0, %c1_i32 : i32
    %1 = arith.addi %0, %arg1 : i32
    %c0_i32 = arith.constant 0 : i32
    %c0_i32_0 = arith.constant 0 : i32
    return %1, %c0_i32 : i32, i32
  }
  func.func @transform_2(%arg0: i32, %arg1: i32) -> (i32, i32) {
    %c0_i32 = arith.constant 0 : i32
    %c0_i32_0 = arith.constant 0 : i32
    return %arg0, %c0_i32 : i32, i32
  }
}

</mosaic_0001>

<llo_original>
// kernel: tpu_custom_call.1
$region0: #{tpu_custom_call.1}
  #allocation0 [shape = 'u32[]', space=smem, size = 0x4, offset = 0x4, fixed_abs, tag = 'smem constant byte address 0x4 - core index']
  #allocation1 [shape = 'u32[72,128]{1,0:T(1,128)}', space=vmem, size = 0x9000, scoped, tag = 'internal scratch']
  #allocation2 [shape = 'f32[16,128]{1,0:T(8,128)}', space=vmem, size = 0x2000, scoped, tag = 'scratch operand']
  %s0 = inlined_call_operand.hbm [shape: f32[16,128], index: 0, kind: input, shape index: {}]
  %s1 = inlined_call_operand.hbm [shape: f32[16,128], index: 1, kind: input, shape index: {}]
  %s2 = inlined_call_operand.hbm [shape: f32[1,1], index: 2, kind: output, shape index: {}]
  %s3 = sld [smem:[#allocation0]]
  $region34: #{tpu_custom_call.1} parent=0
    _
  %s5 = ssub.s32 1, %s3
  %s6 = scalar_select 0, %s5, %s3
  $region1: #{tpu_custom_call.1} parent=0
    #allocation3 [shape = 'u8[8192]{0}', space=vmem, size = 0x2000, scoped, tag = 'input window, operand 0, single buffered']
    #allocation4 [shape = 's32[1]{0}', space=sflag, size = 0x4, scoped, tag = 'scoped memory for tpu_custom_call.1']
    #allocation5 [shape = 's32[1]{0}', space=sflag, size = 0x4, scoped, tag = 'scoped memory for tpu_custom_call.1']
    #allocation6 [shape = 'u8[8192]{0}', space=vmem, size = 0x2000, scoped, tag = 'input window, operand 1, single buffered']
    #allocation7 [shape = 's32[1]{0}', space=sflag, size = 0x4, scoped, tag = 'scoped memory for tpu_custom_call.1']
    #allocation8 [shape = 'u8[512]{0}', space=smem, size = 0x200, scoped, tag = 'output window, operand 0, single buffered']
    %7 = vsyncpa [#allocation4], 0
    %8 = vsyncpa [#allocation7], 0
    %9 = vsyncpa [#allocation5], 0
    // Predicated region
    $region2: #{tpu_custom_call.1} parent=1 // pred_check
      _
    $region3: #{tpu_custom_call.1} parent=1 // pred_check_branch
      %11 = sbr.rel (0) target = $region5
    $region4: #{tpu_custom_call.1} parent=1 // pred_region
      %s12 = sadd.s32 0, 0
      %s13 = smul.u32 2, %s12
      %15 = vsyncadd [#allocation4], 0
      %s16 = smul.addr %s13, 8
      %s17 = scalar_lea.hbm %s0, %s16
      %s18 = sshll.u32 %s17, 4
      %s19 = int_to_ptr.hbm [resolvable:$true] %s18
      %s20 = sshll.u32 [#allocation3], 4
      %s21 = int_to_ptr.vmem [resolvable:$true] %s20
      %26 = dma.hbm_to_vmem [thread:$0]  %s19, 256, %s21, [#allocation4], 128, 128, 8
    $region5: #{tpu_custom_call.1} parent=1 // pred_fallthru
      _
    // Predicated region
    $region6: #{tpu_custom_call.1} parent=1 // pred_check
      _
    $region7: #{tpu_custom_call.1} parent=1 // pred_check_branch
      %28 = sbr.rel (0) target = $region9
    $region8: #{tpu_custom_call.1} parent=1 // pred_region
      %s29 = sadd.s32 0, 0
      %s30 = smul.u32 2, %s29
      %32 = vsyncadd [#allocation7], 0
      %s33 = smul.addr %s30, 8
      %s34 = scalar_lea.hbm %s1, %s33
      %s35 = sshll.u32 %s34, 4
      %s36 = int_to_ptr.hbm [resolvable:$true] %s35
      %s37 = sshll.u32 [#allocation6], 4
      %s38 = int_to_ptr.vmem [resolvable:$true] %s37
      %43 = dma.hbm_to_vmem [thread:$0]  %s36, 256, %s38, [#allocation7], 128, 128, 8
    $region9: #{tpu_custom_call.1} parent=1 // pred_fallthru
      _
    // Predicated region
    $region10: #{tpu_custom_call.1} parent=1 // pred_check
      _
    $region11: #{tpu_custom_call.1} parent=1 // pred_check_branch
      %45 = sbr.rel (0) target = $region13
    $region12: #{tpu_custom_call.1} parent=1 // pred_region
      %47 = dma.done [#allocation4], 256
    $region13: #{tpu_custom_call.1} parent=1 // pred_fallthru
      _
    // Predicated region
    $region14: #{tpu_custom_call.1} parent=1 // pred_check
      _
    $region15: #{tpu_custom_call.1} parent=1 // pred_check_branch
      %49 = sbr.rel (0) target = $region17
    $region16: #{tpu_custom_call.1} parent=1 // pred_region
      %51 = dma.done [#allocation7], 256
    $region17: #{tpu_custom_call.1} parent=1 // pred_fallthru
      _
    %s52 = sadd.s32 0, 0
    %s53 = smul.u32 2, %s52
    %s54 = sadd.s32 0, 0
    %s55 = smul.u32 2, %s54
    %p56 = scmp.eq.s32.totalorder 0, 0
    // Predicated region
    $region18: #{tpu_custom_call.1} parent=1 // pred_check
      %p57 = pneg %p56
    $region19: #{tpu_custom_call.1} parent=1 // pred_check_branch
      %59 = sbr.rel (%p57) target = $region21
    $region20: #{tpu_custom_call.1} parent=1 // pred_region
      %60 = vst [vmem:[#allocation2] sm:$0xff] 0.0
      %61 = vst [vmem:[#allocation2 + $0x8] sm:$0xff] 0.0
    $region21: #{tpu_custom_call.1} parent=1 // pred_fallthru
      _
    %v62 = vld [vmem:[#allocation3] sm:$0xff]
    %v63 = vld [vmem:[#allocation3 + $0x8] sm:$0xff]
    %v64 = vld [vmem:[#allocation6] sm:$0xff]
    %v65 = vld [vmem:[#allocation6 + $0x8] sm:$0xff]
    %v66 = vmax.f32 %v62, 0.0
    %v67 = vmax.f32 %v63, 0.0
    %v68 = vmul.f32 %v62, %v64
    %v69 = vmul.f32 %v63, %v65
    %v70 = vsub.f32 %v66, %v68
    %v71 = vsub.f32 %v67, %v69
    %v72 = vand.u32 2147483647, %v62
    %v73 = vand.u32 2147483647, %v63
    %v74 = vsub.f32 0.0, %v72
    %v75 = vsub.f32 0.0, %v73
    %v76 = vmul.f32 %v74, 1.442695
    %v77 = vpow.pop %v76
    %v78 = vmul.f32 %v75, 1.442695
    %v79 = vpow.pop %v78
    %v80 = vadd.f32 %v77, 1.0
    %v81 = vlog2.pop %v80
    %v82 = vmul.f32 %v81, 0.6931472
    %v83 = vmul.f32 -0.5, %v77
    %v84 = vadd.f32 %v83, 1.0
    %v85 = vmul.f32 %v84, %v77
    %v86 = vand.u32 2147483647, %v77
    %vm87 = vcmp.lt.f32.partialorder %v86, 0.0004427343
    %v88 = vsel %vm87, %v85, %v82
    %v89 = vadd.f32 %v79, 1.0
    %v90 = vlog2.pop %v89
    %v91 = vmul.f32 %v90, 0.6931472
    %v92 = vmul.f32 -0.5, %v79
    %v93 = vadd.f32 %v92, 1.0
    %v94 = vmul.f32 %v93, %v79
    %v95 = vand.u32 2147483647, %v79
    %vm96 = vcmp.lt.f32.partialorder %v95, 0.0004427343
    %v97 = vsel %vm96, %v94, %v91
    %v98 = vadd.f32 %v70, %v88
    %v99 = vadd.f32 %v71, %v97
    %v100 = vsub.f32 0.0, %v62
    %v101 = vsub.f32 0.0, %v63
    %v102 = vmul.f32 %v64, 2.0
    %v103 = vmul.f32 %v65, 2.0
    %v104 = vsub.f32 %v102, 1.0
    %v105 = vsub.f32 %v103, 1.0
    %v106 = vmul.f32 %v100, %v104
    %v107 = vmul.f32 %v101, %v105
    %v108 = vmin.f32 %v106, 0.0
    %v109 = vmin.f32 %v107, 0.0
    %v110 = vand.u32 2147483647, %v106
    %v111 = vand.u32 2147483647, %v107
    %v112 = vsub.f32 0.0, %v110
    %v113 = vsub.f32 0.0, %v111
    %v114 = vmul.f32 %v112, 1.442695
    %v115 = vpow.pop %v114
    %v116 = vmul.f32 %v113, 1.442695
    %v117 = vpow.pop %v116
    %v118 = vadd.f32 %v115, 1.0
    %v119 = vlog2.pop %v118
    %v120 = vmul.f32 %v119, 0.6931472
    %v121 = vmul.f32 -0.5, %v115
    %v122 = vadd.f32 %v121, 1.0
    %v123 = vmul.f32 %v122, %v115
    %v124 = vand.u32 2147483647, %v115
    %vm125 = vcmp.lt.f32.partialorder %v124, 0.0004427343
    %v126 = vsel %vm125, %v123, %v120
    %v127 = vadd.f32 %v117, 1.0
    %v128 = vlog2.pop %v127
    %v129 = vmul.f32 %v128, 0.6931472
    %v130 = vmul.f32 -0.5, %v117
    %v131 = vadd.f32 %v130, 1.0
    %v132 = vmul.f32 %v131, %v117
    %v133 = vand.u32 2147483647, %v117
    %vm134 = vcmp.lt.f32.partialorder %v133, 0.0004427343
    %v135 = vsel %vm134, %v132, %v129
    %v136 = vsub.f32 %v108, %v126
    %v137 = vsub.f32 %v109, %v135
    %v138 = vld [vmem:[#allocation2] sm:$0xff]
    %v139 = vld [vmem:[#allocation2 + $0x8] sm:$0xff]
    %v140 = vmul.f32 %v136, 0.5
    %v141 = vmul.f32 %v137, 0.5
    %v142 = vmul.f32 %v140, 1.442695
    %v143 = vpow.pop %v142
    %v144 = vmul.f32 %v141, 1.442695
    %v145 = vpow.pop %v144
    %v146 = vmul.f32 %v143, %v98
    %v147 = vmul.f32 %v145, %v99
    %v148 = vadd.f32 %v138, %v146
    %v149 = vadd.f32 %v139, %v147
    %150 = vst [vmem:[#allocation2] sm:$0xff] %v148
    %151 = vst [vmem:[#allocation2 + $0x8] sm:$0xff] %v149
    // Predicated region
    $region22: #{tpu_custom_call.1} parent=1 // pred_check
      %p152 = pneg %p56
    $region23: #{tpu_custom_call.1} parent=1 // pred_check_branch
      %154 = sbr.rel (%p152) target = $region25
    $region24: #{tpu_custom_call.1} parent=1 // pred_region
      %v155 = vld [vmem:[#allocation2] sm:$0xff]
      %v156 = vld [vmem:[#allocation2 + $0x8] sm:$0xff]
      %v157 = vadd.f32 %v155, %v156
      %158 = vadd.xlane.f32.xlu0 %v157
      %v159 = vpop.xlane.xlu0 %158
      %v160 = vrot.slane %v159, 4
      %v161 = vadd.f32 %v159, %v160
      %v162 = vrot.slane %v161, 2
      %v163 = vadd.f32 %v161, %v162
      %v164 = vrot.slane %v163, 1
      %v165 = vadd.f32 %v163, %v164
      %s166 = vtos %v165
      %s167 = scalar_lea.smem [#allocation8], 0
      %168 = sst [smem:[%s167]] %s166
    $region25: #{tpu_custom_call.1} parent=1 // pred_fallthru
      _
    // Predicated region
    $region26: #{tpu_custom_call.1} parent=1 // pred_check
      _
    $region27: #{tpu_custom_call.1} parent=1 // pred_check_branch
      %170 = sbr.rel (0) target = $region29
    $region28: #{tpu_custom_call.1} parent=1 // pred_region
      %172 = vsyncadd [#allocation5], 0
      %s174 = sshll.u32 %s2, 4
      %s175 = int_to_ptr.hbm [resolvable:$true] %s174
      %177 = dma.smem_to_hbm [#allocation8], 16, %s175, [#allocation5]
    $region29: #{tpu_custom_call.1} parent=1 // pred_fallthru
      _
    // Predicated region
    $region30: #{tpu_custom_call.1} parent=1 // pred_check
      _
    $region31: #{tpu_custom_call.1} parent=1 // pred_check_branch
      %179 = sbr.rel (0) target = $region33
    $region32: #{tpu_custom_call.1} parent=1 // pred_region
      %181 = dma.done [#allocation5], 16
    $region33: #{tpu_custom_call.1} parent=1 // pred_fallthru
      _
    %182 = sfence
    %183 = vsyncpa [#allocation4], 1
    %184 = vsyncpa [#allocation7], 1
    %185 = vsyncpa [#allocation5], 1

</llo_original>
